<compile_context>
chip_gen: v5e
topology: v5e:2x2
jax: 0.10.0
libtpu: 0.0.40
codegen_flags: <defaults>
</compile_context>

<pallas_src>
import functools
import math

import jax
import jax.numpy as jnp
from jax import lax
from jax.experimental import pallas as pl
from jax.experimental.pallas import tpu as pltpu

EMBED_DIM = 128      # embedding_dim (d_model)
DROP_RATE = 0.1      # rate
FEAT_C = 2048        # fixed by nn.Linear(2048, embedding_dim)
TM_MAX = 1024        # row-tile size (multiple of 16 -> valid bf16/f32 sublane tiling)


def encoder_fc_kernel(seed_ref, x_ref, w_ref, b_ref, o_ref, *, rate, tm, feat):
    """o = ReLU(dropout(x) @ w + b) for one (tm, feat) row tile of X."""
    x = x_ref[...]                                    # (tm, feat) bf16

    if rate > 0.0:
        # Inverted dropout (training-mode nn.Dropout semantics).
        # Portable int32 counter hash: unique per (seed, global element index),
        # so different M tiles get independent masks.  Integer-threshold keep
        # test — no float convert / divide on the mask path.
        seed = seed_ref[0]                            # int32 scalar (SMEM)
        row0 = pl.program_id(0) * tm
        rows = lax.broadcasted_iota(jnp.int32, x.shape, 0) + row0
        cols = lax.broadcasted_iota(jnp.int32, x.shape, 1)
        h = rows * jnp.int32(feat) + cols + seed * jnp.int32(-1640531527)  # 0x9E3779B9
        h = (h ^ (h >> 16)) * jnp.int32(0x45D9F3B)
        h = (h ^ (h >> 13)) * jnp.int32(0x45D9F3B)
        h = h ^ (h >> 16)
        bits31 = h & jnp.int32(0x7FFFFFFF)            # ~uniform in [0, 2^31)
        keep = bits31 >= jnp.int32(int(rate * (1 << 31)))
        scale = jnp.asarray(1.0 / (1.0 - rate), dtype=x.dtype)
        x = jnp.where(keep, x, jnp.zeros_like(x)) * scale

    acc = jnp.dot(x, w_ref[...], preferred_element_type=jnp.float32)  # (tm, N) f32
    o_ref[...] = jnp.maximum(acc + b_ref[...], 0.0).astype(o_ref.dtype)


def encoder_fc(x_rows, fc_weight, fc_bias, seed, *, rate=DROP_RATE, tm_max=TM_MAX):
    """x_rows: [M, 2048] flattened spatial features.
    fc_weight: [embedding_dim, 2048] (PyTorch layout), fc_bias: [embedding_dim].
    Returns ReLU(dropout(x_rows) @ fc_weight.T + fc_bias) as f32 [M, embedding_dim]."""
    M, K = x_rows.shape
    N, K2 = fc_weight.shape
    assert K == FEAT_C and K2 == FEAT_C, "fc expects 2048 input features"

    # bf16 feed to the MXU (f32 accumulate) — halves HBM read traffic.
    x_bf = x_rows.astype(jnp.bfloat16)
    w_bf = jnp.transpose(fc_weight).astype(jnp.bfloat16)     # [K, N]
    b_f32 = fc_bias.reshape(1, N).astype(jnp.float32)
    seed_arr = jnp.asarray(seed, dtype=jnp.int32).reshape((1,))

    if M <= tm_max:
        tm, m_pad = M, M          # single full-M block: no (8,128) tiling constraint
    else:
        tm = tm_max
        m_pad = ((M + tm - 1) // tm) * tm
        if m_pad != M:
            x_bf = jnp.pad(x_bf, ((0, m_pad - M), (0, 0)))

    grid = (m_pad // tm,)

    out = pl.pallas_call(
        functools.partial(encoder_fc_kernel, rate=float(rate), tm=tm, feat=K),
        out_shape=jax.ShapeDtypeStruct((m_pad, N), jnp.float32),
        grid_spec=pltpu.PrefetchScalarGridSpec(
            num_scalar_prefetch=1,
            grid=grid,
            in_specs=[
                pl.BlockSpec((tm, K), lambda i, sref: (i, 0)),   # X row tile
                pl.BlockSpec((K, N), lambda i, sref: (0, 0)),    # W resident (0.5 MiB bf16)
                pl.BlockSpec((1, N), lambda i, sref: (0, 0)),    # bias
            ],
            out_specs=pl.BlockSpec((tm, N), lambda i, sref: (i, 0)),
        ),
        compiler_params=pltpu.CompilerParams(
            dimension_semantics=("parallel",),   # independent row tiles
        ),
    )(seed_arr, x_bf, w_bf, b_f32)

    return out[:M] if m_pad != M else out


def cnn_encoder_forward_nhwc(feats_nhwc, fc_weight, fc_bias, seed, *, rate=DROP_RATE):
    """Channels-last entry point (preferred: no slab transpose before the kernel)."""
    B, H, W, C = feats_nhwc.shape
    y = encoder_fc(feats_nhwc.reshape(B * H * W, C), fc_weight, fc_bias, seed, rate=rate)
    return y.reshape(B, H * W, -1)


def cnn_encoder_forward(feats_nchw, fc_weight, fc_bias, seed, *, rate=DROP_RATE):
    """PyTorch-parity entry point (backbone emits NCHW).  The permute below is
    layout glue costing an extra full-slab HBM pass — prefer the NHWC entry."""
    x = jnp.transpose(feats_nchw, (0, 2, 3, 1))
    return cnn_encoder_forward_nhwc(x, fc_weight, fc_bias, seed, rate=rate)


if __name__ == "__main__":
    key = jax.random.PRNGKey(0)
    k_w, k_b, k_x = jax.random.split(key, 3)

    # Deterministic fc parameters (PyTorch nn.Linear default init bounds).
    bound = 1.0 / math.sqrt(FEAT_C)
    fc_weight = jax.random.uniform(k_w, (EMBED_DIM, FEAT_C), jnp.float32, -bound, bound)
    fc_bias = jax.random.uniform(k_b, (EMBED_DIM,), jnp.float32, -bound, bound)

    # Small synthetic "backbone output": B=2, 4x4 spatial, C=2048 (fixed by fc).
    B, H, W = 2, 4, 4
    feats_nhwc = jax.random.normal(k_x, (B, H, W, FEAT_C), jnp.float32)

    # Pure-JAX reference (dropout off), using the same bf16 feed as the kernel.
    ref = jnp.maximum(
        jnp.einsum(
            "bmk,kn->bmn",
            feats_nhwc.reshape(B, H * W, FEAT_C).astype(jnp.bfloat16),
            jnp.transpose(fc_weight).astype(jnp.bfloat16),
            preferred_element_type=jnp.float32,
        )
        + fc_bias,
        0.0,
    )

    # 1) Kernel with dropout disabled matches the reference.
    y0 = cnn_encoder_forward_nhwc(feats_nhwc, fc_weight, fc_bias, 0, rate=0.0)
    y0 = jax.block_until_ready(y0)
    assert y0.shape == (B, H * W, EMBED_DIM)
    assert jnp.allclose(y0, ref, atol=2e-2, rtol=2e-2), "rate=0 mismatch vs reference"

    # 2) PyTorch-parity NCHW entry point agrees with the NHWC path.
    y0_nchw = cnn_encoder_forward(
        jnp.transpose(feats_nhwc, (0, 3, 1, 2)), fc_weight, fc_bias, 0, rate=0.0
    )
    y0_nchw = jax.block_until_ready(y0_nchw)
    assert jnp.allclose(y0_nchw, y0, atol=1e-5, rtol=1e-5)

    # 3) Actual forward with training-mode dropout (deterministic seed).
    y = cnn_encoder_forward_nhwc(feats_nhwc, fc_weight, fc_bias, 123, rate=DROP_RATE)
    y = jax.block_until_ready(y)
    assert y.shape == (B, H * W, EMBED_DIM)
    assert bool(jnp.all(y >= 0.0))   # ReLU output

    print("KERNEL_OK")
</pallas_src>

<mosaic_0001>
module attributes {stable_mosaic.version = 11 : i64} {
  func.func @encoder_fc_kernel(%arg0: i32, %arg1: memref<1xi32, #tpu.memory_space<smem>>, %arg2: memref<32x2048xbf16, #tpu.memory_space<vmem>>, %arg3: memref<2048x128xbf16, #tpu.memory_space<vmem>>, %arg4: memref<1x128xf32, #tpu.memory_space<vmem>>, %arg5: memref<32x128xf32, #tpu.memory_space<vmem>>) attributes {dimension_semantics = [#tpu.dimension_semantics<parallel>], iteration_bounds = array<i64: 1>, scalar_prefetch = 1 : i64, scratch_operands = 0 : i64, tpu.core_type = #tpu.core_type<tc>, window_params = [{transform_indices = @transform_0, window_bounds = array<i64: 32, 2048>}, {pipeline_mode = #tpu.pipeline_mode<synchronous>, transform_indices = @transform_1, window_bounds = array<i64: 2048, 128>}, {pipeline_mode = #tpu.pipeline_mode<synchronous>, transform_indices = @transform_2, window_bounds = array<i64: 1, 128>}, {transform_indices = @transform_3, window_bounds = array<i64: 32, 128>}]} {
    %c0 = arith.constant 0 : index
    %c0_0 = arith.constant 0 : index
    %0 = vector.load %arg2[%c0, %c0_0] : memref<32x2048xbf16, #tpu.memory_space<vmem>>, vector<32x2048xbf16>
    %c0_1 = arith.constant 0 : index
    %c0_2 = arith.constant 0 : index
    %1 = vector.load %arg3[%c0_1, %c0_2] : memref<2048x128xbf16, #tpu.memory_space<vmem>>, vector<2048x128xbf16>
    %cst = arith.constant dense<0.000000e+00> : vector<32x128xf32>
    %2 = tpu.matmul %0, %1, %cst {dimension_numbers = #tpu.dot_dimension_numbers<[1], [0], [0], [1], [0, 0, 1, 1], [], []>} : vector<32x2048xbf16>, vector<2048x128xbf16>, vector<32x128xf32> -> vector<32x128xf32>
    %c0_3 = arith.constant 0 : index
    %c0_4 = arith.constant 0 : index
    %3 = vector.load %arg4[%c0_3, %c0_4] : memref<1x128xf32, #tpu.memory_space<vmem>>, vector<1x128xf32>
    %4 = vector.broadcast %3 : vector<1x128xf32> to vector<32x128xf32>
    %5 = arith.addf %2, %4 : vector<32x128xf32>
    %cst_5 = arith.constant 0.000000e+00 : f32
    %6 = vector.broadcast %cst_5 : f32 to vector<32x128xf32>
    %7 = arith.maximumf %5, %6 : vector<32x128xf32>
    %c0_6 = arith.constant 0 : index
    %c0_7 = arith.constant 0 : index
    %8 = vector.load %arg5[%c0_6, %c0_7] : memref<32x128xf32, #tpu.memory_space<vmem>>, vector<32x128xf32>
    tpu.vector_store %arg5[%c0_6, %c0_7], %7 {strides = array<i32>} : memref<32x128xf32, #tpu.memory_space<vmem>>, vector<32x128xf32>,
    return
  }
  func.func @transform_0(%arg0: i32, %arg1: memref<1xi32, #tpu.memory_space<smem>>) -> (i32, i32) {
    %c0_i32 = arith.constant 0 : i32
    %c0_i32_0 = arith.constant 0 : i32
    return %arg0, %c0_i32 : i32, i32
  }
  func.func @transform_1(%arg0: i32, %arg1: memref<1xi32, #tpu.memory_space<smem>>) -> (i32, i32) {
    %c0_i32 = arith.constant 0 : i32
    %c0_i32_0 = arith.constant 0 : i32
    %c0_i32_1 = arith.constant 0 : i32
    return %c0_i32, %c0_i32_0 : i32, i32
  }
  func.func @transform_2(%arg0: i32, %arg1: memref<1xi32, #tpu.memory_space<smem>>) -> (i32, i32) {
    %c0_i32 = arith.constant 0 : i32
    %c0_i32_0 = arith.constant 0 : i32
    %c0_i32_1 = arith.constant 0 : i32
    return %c0_i32, %c0_i32_0 : i32, i32
  }
  func.func @transform_3(%arg0: i32, %arg1: memref<1xi32, #tpu.memory_space<smem>>) -> (i32, i32) {
    %c0_i32 = arith.constant 0 : i32
    %c0_i32_0 = arith.constant 0 : i32
    return %arg0, %c0_i32 : i32, i32
  }
}

</mosaic_0001>

<llo_original>
// kernel: tpu_custom_call.1
$region0: #{tpu_custom_call.1}
  #allocation0 [shape = 'u32[]', space=smem, size = 0x4, offset = 0x4, fixed_abs, tag = 'smem constant byte address 0x4 - core index']
  #allocation1 [shape = 'u32[72,128]{1,0:T(1,128)}', space=vmem, size = 0x9000, scoped, tag = 'internal scratch']
  #allocation2 [shape = 's32[1]{0}', space=sflag, size = 0x4, scoped, tag = 'scoped memory for tpu_custom_call.1']
  #allocation3 [shape = 's32[1]{0:T(128)S(6)}', space=smem, size = 0x200, scoped, tag = 'prefetched SMEM operand 0']
  %s0 = inlined_call_operand.<no memory space> [shape: s32[1], index: 0, kind: input, shape index: {}]
  %s1 = inlined_call_operand.hbm [shape: bf16[32,2048], index: 1, kind: input, shape index: {}]
  %s2 = inlined_call_operand.hbm [shape: bf16[2048,128], index: 2, kind: input, shape index: {}]
  %s3 = inlined_call_operand.vmem [shape: f32[1,128], index: 3, kind: input, shape index: {}]
  %s4 = inlined_call_operand.hbm [shape: f32[32,128], index: 4, kind: output, shape index: {}]
  %s5 = sld [smem:[#allocation0]]
  $region30: #{tpu_custom_call.1} parent=0
    _
  %s7 = ssub.s32 1, %s5
  %s8 = scalar_select 0, %s7, %s5
  %9 = sst [smem:[#allocation3]] %s0
  $region1: #{tpu_custom_call.1} parent=0
    #allocation4 [shape = 'u8[131072]{0}', space=vmem, size = 0x20000, scoped, tag = 'input window, operand 1, single buffered']
    #allocation5 [shape = 's32[1]{0}', space=sflag, size = 0x4, scoped, tag = 'scoped memory for tpu_custom_call.1']
    #allocation6 [shape = 's32[1]{0}', space=sflag, size = 0x4, scoped, tag = 'scoped memory for tpu_custom_call.1']
    #allocation7 [shape = 'u8[524288]{0}', space=vmem, size = 0x80000, scoped, tag = 'input window, operand 2, single buffered']
    #allocation8 [shape = 's32[1]{0}', space=sflag, size = 0x4, scoped, tag = 'scoped memory for tpu_custom_call.1']
    #allocation9 [shape = 'u8[16384]{0}', space=vmem, size = 0x4000, scoped, tag = 'output window, operand 0, single buffered']
    %10 = vsyncpa [#allocation5], 0
    %11 = vsyncpa [#allocation8], 0
    %12 = vsyncpa [#allocation6], 0
    // Predicated region
    $region2: #{tpu_custom_call.1} parent=1 // pred_check
      _
    $region3: #{tpu_custom_call.1} parent=1 // pred_check_branch
      %14 = sbr.rel (0) target = $region5
    $region4: #{tpu_custom_call.1} parent=1 // pred_region
      %16 = vsyncadd [#allocation5], 0
      %s17 = sshll.u32 %s1, 4
      %s18 = int_to_ptr.hbm [resolvable:$true] %s17
      %s19 = sshll.u32 [#allocation4], 4
      %s20 = int_to_ptr.vmem [resolvable:$true] %s19
      %25 = dma.hbm_to_vmem [thread:$0]  %s18, 4096, %s20, [#allocation5], 1024, 1024, 64
    $region5: #{tpu_custom_call.1} parent=1 // pred_fallthru
      _
    // Predicated region
    $region6: #{tpu_custom_call.1} parent=1 // pred_check
      _
    $region7: #{tpu_custom_call.1} parent=1 // pred_check_branch
      %27 = sbr.rel (0) target = $region9
    $region8: #{tpu_custom_call.1} parent=1 // pred_region
      %29 = vsyncadd [#allocation8], 0
      %s30 = sshll.u32 %s2, 4
      %s31 = int_to_ptr.hbm [resolvable:$true] %s30
      %s32 = sshll.u32 [#allocation7], 4
      %s33 = int_to_ptr.vmem [resolvable:$true] %s32
      %38 = dma.hbm_to_vmem [thread:$0]  %s31, 16384, %s33, [#allocation8], 64, 64, 4
    $region9: #{tpu_custom_call.1} parent=1 // pred_fallthru
      _
    // Predicated region
    $region10: #{tpu_custom_call.1} parent=1 // pred_check
      _
    $region11: #{tpu_custom_call.1} parent=1 // pred_check_branch
      %40 = sbr.rel (0) target = $region13
    $region12: #{tpu_custom_call.1} parent=1 // pred_region
      _
    $region13: #{tpu_custom_call.1} parent=1 // pred_fallthru
      _
    // Predicated region
    $region14: #{tpu_custom_call.1} parent=1 // pred_check
      _
    $region15: #{tpu_custom_call.1} parent=1 // pred_check_branch
      %42 = sbr.rel (0) target = $region17
    $region16: #{tpu_custom_call.1} parent=1 // pred_region
      %44 = dma.done [#allocation5], 4096
    $region17: #{tpu_custom_call.1} parent=1 // pred_fallthru
      _
    // Predicated region
    $region18: #{tpu_custom_call.1} parent=1 // pred_check
      _
    $region19: #{tpu_custom_call.1} parent=1 // pred_check_branch
      %46 = sbr.rel (0) target = $region21
    $region20: #{tpu_custom_call.1} parent=1 // pred_region
      %48 = dma.done [#allocation8], 16384
    $region21: #{tpu_custom_call.1} parent=1 // pred_fallthru
      _
    %v49 = vld [vmem:[#allocation4] sm:$0xff]
    %v50 = vld [vmem:[#allocation4 + $0x8] sm:$0xff]
    %v51 = vld [vmem:[#allocation4 + $0x10] sm:$0xff]
    %v52 = vld [vmem:[#allocation4 + $0x18] sm:$0xff]
    %v53 = vld [vmem:[#allocation4 + $0x20] sm:$0xff]
    %v54 = vld [vmem:[#allocation4 + $0x28] sm:$0xff]
    %v55 = vld [vmem:[#allocation4 + $0x30] sm:$0xff]
    %v56 = vld [vmem:[#allocation4 + $0x38] sm:$0xff]
    %v57 = vld [vmem:[#allocation4 + $0x40] sm:$0xff]
    %v58 = vld [vmem:[#allocation4 + $0x48] sm:$0xff]
    %v59 = vld [vmem:[#allocation4 + $0x50] sm:$0xff]
    %v60 = vld [vmem:[#allocation4 + $0x58] sm:$0xff]
    %v61 = vld [vmem:[#allocation4 + $0x60] sm:$0xff]
    %v62 = vld [vmem:[#allocation4 + $0x68] sm:$0xff]
    %v63 = vld [vmem:[#allocation4 + $0x70] sm:$0xff]
    %v64 = vld [vmem:[#allocation4 + $0x78] sm:$0xff]
    %v65 = vld [vmem:[#allocation4 + $0x80] sm:$0xff]
    %v66 = vld [vmem:[#allocation4 + $0x88] sm:$0xff]
    %v67 = vld [vmem:[#allocation4 + $0x90] sm:$0xff]
    %v68 = vld [vmem:[#allocation4 + $0x98] sm:$0xff]
    %v69 = vld [vmem:[#allocation4 + $0xa0] sm:$0xff]
    %v70 = vld [vmem:[#allocation4 + $0xa8] sm:$0xff]
    %v71 = vld [vmem:[#allocation4 + $0xb0] sm:$0xff]
    %v72 = vld [vmem:[#allocation4 + $0xb8] sm:$0xff]
    %v73 = vld [vmem:[#allocation4 + $0xc0] sm:$0xff]
    %v74 = vld [vmem:[#allocation4 + $0xc8] sm:$0xff]
    %v75 = vld [vmem:[#allocation4 + $0xd0] sm:$0xff]
    %v76 = vld [vmem:[#allocation4 + $0xd8] sm:$0xff]
    %v77 = vld [vmem:[#allocation4 + $0xe0] sm:$0xff]
    %v78 = vld [vmem:[#allocation4 + $0xe8] sm:$0xff]
    %v79 = vld [vmem:[#allocation4 + $0xf0] sm:$0xff]
    %v80 = vld [vmem:[#allocation4 + $0xf8] sm:$0xff]
    %v81 = vld [vmem:[#allocation7] sm:$0xf]
    %v82 = vld [vmem:[#allocation7 + $0x4] sm:$0xf]
    %v83 = vld [vmem:[#allocation7 + $0x8] sm:$0xf]
    %v84 = vld [vmem:[#allocation7 + $0xc] sm:$0xf]
    %v85 = vld [vmem:[#allocation7 + $0x10] sm:$0xf]
    %v86 = vld [vmem:[#allocation7 + $0x14] sm:$0xf]
    %v87 = vld [vmem:[#allocation7 + $0x18] sm:$0xf]
    %v88 = vld [vmem:[#allocation7 + $0x1c] sm:$0xf]
    %v89 = vld [vmem:[#allocation7 + $0x20] sm:$0xf]
    %v90 = vld [vmem:[#allocation7 + $0x24] sm:$0xf]
    %v91 = vld [vmem:[#allocation7 + $0x28] sm:$0xf]
    %v92 = vld [vmem:[#allocation7 + $0x2c] sm:$0xf]
    %v93 = vld [vmem:[#allocation7 + $0x30] sm:$0xf]
    %v94 = vld [vmem:[#allocation7 + $0x34] sm:$0xf]
    %v95 = vld [vmem:[#allocation7 + $0x38] sm:$0xf]
    %v96 = vld [vmem:[#allocation7 + $0x3c] sm:$0xf]
    %v97 = vld [vmem:[#allocation7 + $0x40] sm:$0xf]
    %v98 = vld [vmem:[#allocation7 + $0x44] sm:$0xf]
    %v99 = vld [vmem:[#allocation7 + $0x48] sm:$0xf]
    %v100 = vld [vmem:[#allocation7 + $0x4c] sm:$0xf]
    %v101 = vld [vmem:[#allocation7 + $0x50] sm:$0xf]
    %v102 = vld [vmem:[#allocation7 + $0x54] sm:$0xf]
    %v103 = vld [vmem:[#allocation7 + $0x58] sm:$0xf]
    %v104 = vld [vmem:[#allocation7 + $0x5c] sm:$0xf]
    %v105 = vld [vmem:[#allocation7 + $0x60] sm:$0xf]
    %v106 = vld [vmem:[#allocation7 + $0x64] sm:$0xf]
    %v107 = vld [vmem:[#allocation7 + $0x68] sm:$0xf]
    %v108 = vld [vmem:[#allocation7 + $0x6c] sm:$0xf]
    %v109 = vld [vmem:[#allocation7 + $0x70] sm:$0xf]
    %v110 = vld [vmem:[#allocation7 + $0x74] sm:$0xf]
    %v111 = vld [vmem:[#allocation7 + $0x78] sm:$0xf]
    %v112 = vld [vmem:[#allocation7 + $0x7c] sm:$0xf]
    %v113 = vld [vmem:[#allocation7 + $0x80] sm:$0xf]
    %v114 = vld [vmem:[#allocation7 + $0x84] sm:$0xf]
    %v115 = vld [vmem:[#allocation7 + $0x88] sm:$0xf]
    %v116 = vld [vmem:[#allocation7 + $0x8c] sm:$0xf]
    %v117 = vld [vmem:[#allocation7 + $0x90] sm:$0xf]
    %v118 = vld [vmem:[#allocation7 + $0x94] sm:$0xf]
    %v119 = vld [vmem:[#allocation7 + $0x98] sm:$0xf]
    %v120 = vld [vmem:[#allocation7 + $0x9c] sm:$0xf]
    %v121 = vld [vmem:[#allocation7 + $0xa0] sm:$0xf]
    %v122 = vld [vmem:[#allocation7 + $0xa4] sm:$0xf]
    %v123 = vld [vmem:[#allocation7 + $0xa8] sm:$0xf]
    %v124 = vld [vmem:[#allocation7 + $0xac] sm:$0xf]
    %v125 = vld [vmem:[#allocation7 + $0xb0] sm:$0xf]
    %v126 = vld [vmem:[#allocation7 + $0xb4] sm:$0xf]
    %v127 = vld [vmem:[#allocation7 + $0xb8] sm:$0xf]
    %v128 = vld [vmem:[#allocation7 + $0xbc] sm:$0xf]
    %v129 = vld [vmem:[#allocation7 + $0xc0] sm:$0xf]
    %v130 = vld [vmem:[#allocation7 + $0xc4] sm:$0xf]
    %v131 = vld [vmem:[#allocation7 + $0xc8] sm:$0xf]
    %v132 = vld [vmem:[#allocation7 + $0xcc] sm:$0xf]
    %v133 = vld [vmem:[#allocation7 + $0xd0] sm:$0xf]
    %v134 = vld [vmem:[#allocation7 + $0xd4] sm:$0xf]
    %v135 = vld [vmem:[#allocation7 + $0xd8] sm:$0xf]
    %v136 = vld [vmem:[#allocation7 + $0xdc] sm:$0xf]
    %v137 = vld [vmem:[#allocation7 + $0xe0] sm:$0xf]
    %v138 = vld [vmem:[#allocation7 + $0xe4] sm:$0xf]
    %v139 = vld [vmem:[#allocation7 + $0xe8] sm:$0xf]
    %v140 = vld [vmem:[#allocation7 + $0xec] sm:$0xf]
    %v141 = vld [vmem:[#allocation7 + $0xf0] sm:$0xf]
    %v142 = vld [vmem:[#allocation7 + $0xf4] sm:$0xf]
    %v143 = vld [vmem:[#allocation7 + $0xf8] sm:$0xf]
    %v144 = vld [vmem:[#allocation7 + $0xfc] sm:$0xf]
    %v145 = vld [vmem:[#allocation7 + $0x100] sm:$0xf]
    %v146 = vld [vmem:[#allocation7 + $0x104] sm:$0xf]
    %v147 = vld [vmem:[#allocation7 + $0x108] sm:$0xf]
    %v148 = vld [vmem:[#allocation7 + $0x10c] sm:$0xf]
    %v149 = vld [vmem:[#allocation7 + $0x110] sm:$0xf]
    %v150 = vld [vmem:[#allocation7 + $0x114] sm:$0xf]
    %v151 = vld [vmem:[#allocation7 + $0x118] sm:$0xf]
    %v152 = vld [vmem:[#allocation7 + $0x11c] sm:$0xf]
    %v153 = vld [vmem:[#allocation7 + $0x120] sm:$0xf]
    %v154 = vld [vmem:[#allocation7 + $0x124] sm:$0xf]
    %v155 = vld [vmem:[#allocation7 + $0x128] sm:$0xf]
    %v156 = vld [vmem:[#allocation7 + $0x12c] sm:$0xf]
    %v157 = vld [vmem:[#allocation7 + $0x130] sm:$0xf]
    %v158 = vld [vmem:[#allocation7 + $0x134] sm:$0xf]
    %v159 = vld [vmem:[#allocation7 + $0x138] sm:$0xf]
    %v160 = vld [vmem:[#allocation7 + $0x13c] sm:$0xf]
    %v161 = vld [vmem:[#allocation7 + $0x140] sm:$0xf]
    %v162 = vld [vmem:[#allocation7 + $0x144] sm:$0xf]
    %v163 = vld [vmem:[#allocation7 + $0x148] sm:$0xf]
    %v164 = vld [vmem:[#allocation7 + $0x14c] sm:$0xf]
    %v165 = vld [vmem:[#allocation7 + $0x150] sm:$0xf]
    %v166 = vld [vmem:[#allocation7 + $0x154] sm:$0xf]
    %v167 = vld [vmem:[#allocation7 + $0x158] sm:$0xf]
    %v168 = vld [vmem:[#allocation7 + $0x15c] sm:$0xf]
    %v169 = vld [vmem:[#allocation7 + $0x160] sm:$0xf]
    %v170 = vld [vmem:[#allocation7 + $0x164] sm:$0xf]
    %v171 = vld [vmem:[#allocation7 + $0x168] sm:$0xf]
    %v172 = vld [vmem:[#allocation7 + $0x16c] sm:$0xf]
    %v173 = vld [vmem:[#allocation7 + $0x170] sm:$0xf]
    %v174 = vld [vmem:[#allocation7 + $0x174] sm:$0xf]
    %v175 = vld [vmem:[#allocation7 + $0x178] sm:$0xf]
    %v176 = vld [vmem:[#allocation7 + $0x17c] sm:$0xf]
    %v177 = vld [vmem:[#allocation7 + $0x180] sm:$0xf]
    %v178 = vld [vmem:[#allocation7 + $0x184] sm:$0xf]
    %v179 = vld [vmem:[#allocation7 + $0x188] sm:$0xf]
    %v180 = vld [vmem:[#allocation7 + $0x18c] sm:$0xf]
    %v181 = vld [vmem:[#allocation7 + $0x190] sm:$0xf]
    %v182 = vld [vmem:[#allocation7 + $0x194] sm:$0xf]
    %v183 = vld [vmem:[#allocation7 + $0x198] sm:$0xf]
    %v184 = vld [vmem:[#allocation7 + $0x19c] sm:$0xf]
    %v185 = vld [vmem:[#allocation7 + $0x1a0] sm:$0xf]
    %v186 = vld [vmem:[#allocation7 + $0x1a4] sm:$0xf]
    %v187 = vld [vmem:[#allocation7 + $0x1a8] sm:$0xf]
    %v188 = vld [vmem:[#allocation7 + $0x1ac] sm:$0xf]
    %v189 = vld [vmem:[#allocation7 + $0x1b0] sm:$0xf]
    %v190 = vld [vmem:[#allocation7 + $0x1b4] sm:$0xf]
    %v191 = vld [vmem:[#allocation7 + $0x1b8] sm:$0xf]
    %v192 = vld [vmem:[#allocation7 + $0x1bc] sm:$0xf]
    %v193 = vld [vmem:[#allocation7 + $0x1c0] sm:$0xf]
    %v194 = vld [vmem:[#allocation7 + $0x1c4] sm:$0xf]
    %v195 = vld [vmem:[#allocation7 + $0x1c8] sm:$0xf]
    %v196 = vld [vmem:[#allocation7 + $0x1cc] sm:$0xf]
    %v197 = vld [vmem:[#allocation7 + $0x1d0] sm:$0xf]
    %v198 = vld [vmem:[#allocation7 + $0x1d4] sm:$0xf]
    %v199 = vld [vmem:[#allocation7 + $0x1d8] sm:$0xf]
    %v200 = vld [vmem:[#allocation7 + $0x1dc] sm:$0xf]
    %v201 = vld [vmem:[#allocation7 + $0x1e0] sm:$0xf]
    %v202 = vld [vmem:[#allocation7 + $0x1e4] sm:$0xf]
    %v203 = vld [vmem:[#allocation7 + $0x1e8] sm:$0xf]
    %v204 = vld [vmem:[#allocation7 + $0x1ec] sm:$0xf]
    %v205 = vld [vmem:[#allocation7 + $0x1f0] sm:$0xf]
    %v206 = vld [vmem:[#allocation7 + $0x1f4] sm:$0xf]
    %v207 = vld [vmem:[#allocation7 + $0x1f8] sm:$0xf]
    %v208 = vld [vmem:[#allocation7 + $0x1fc] sm:$0xf]
    %v209 = vld [vmem:[#allocation7 + $0x200] sm:$0xf]
    %v210 = vld [vmem:[#allocation7 + $0x204] sm:$0xf]
    %v211 = vld [vmem:[#allocation7 + $0x208] sm:$0xf]
    %v212 = vld [vmem:[#allocation7 + $0x20c] sm:$0xf]
    %v213 = vld [vmem:[#allocation7 + $0x210] sm:$0xf]
    %v214 = vld [vmem:[#allocation7 + $0x214] sm:$0xf]
    %v215 = vld [vmem:[#allocation7 + $0x218] sm:$0xf]
    %v216 = vld [vmem:[#allocation7 + $0x21c] sm:$0xf]
    %v217 = vld [vmem:[#allocation7 + $0x220] sm:$0xf]
    %v218 = vld [vmem:[#allocation7 + $0x224] sm:$0xf]
    %v219 = vld [vmem:[#allocation7 + $0x228] sm:$0xf]
    %v220 = vld [vmem:[#allocation7 + $0x22c] sm:$0xf]
    %v221 = vld [vmem:[#allocation7 + $0x230] sm:$0xf]
    %v222 = vld [vmem:[#allocation7 + $0x234] sm:$0xf]
    %v223 = vld [vmem:[#allocation7 + $0x238] sm:$0xf]
    %v224 = vld [vmem:[#allocation7 + $0x23c] sm:$0xf]
    %v225 = vld [vmem:[#allocation7 + $0x240] sm:$0xf]
    %v226 = vld [vmem:[#allocation7 + $0x244] sm:$0xf]
    %v227 = vld [vmem:[#allocation7 + $0x248] sm:$0xf]
    %v228 = vld [vmem:[#allocation7 + $0x24c] sm:$0xf]
    %v229 = vld [vmem:[#allocation7 + $0x250] sm:$0xf]
    %v230 = vld [vmem:[#allocation7 + $0x254] sm:$0xf]
    %v231 = vld [vmem:[#allocation7 + $0x258] sm:$0xf]
    %v232 = vld [vmem:[#allocation7 + $0x25c] sm:$0xf]
    %v233 = vld [vmem:[#allocation7 + $0x260] sm:$0xf]
    %v234 = vld [vmem:[#allocation7 + $0x264] sm:$0xf]
    %v235 = vld [vmem:[#allocation7 + $0x268] sm:$0xf]
    %v236 = vld [vmem:[#allocation7 + $0x26c] sm:$0xf]
    %v237 = vld [vmem:[#allocation7 + $0x270] sm:$0xf]
    %v238 = vld [vmem:[#allocation7 + $0x274] sm:$0xf]
    %v239 = vld [vmem:[#allocation7 + $0x278] sm:$0xf]
    %v240 = vld [vmem:[#allocation7 + $0x27c] sm:$0xf]
    %v241 = vld [vmem:[#allocation7 + $0x280] sm:$0xf]
    %v242 = vld [vmem:[#allocation7 + $0x284] sm:$0xf]
    %v243 = vld [vmem:[#allocation7 + $0x288] sm:$0xf]
    %v244 = vld [vmem:[#allocation7 + $0x28c] sm:$0xf]
    %v245 = vld [vmem:[#allocation7 + $0x290] sm:$0xf]
    %v246 = vld [vmem:[#allocation7 + $0x294] sm:$0xf]
    %v247 = vld [vmem:[#allocation7 + $0x298] sm:$0xf]
    %v248 = vld [vmem:[#allocation7 + $0x29c] sm:$0xf]
    %v249 = vld [vmem:[#allocation7 + $0x2a0] sm:$0xf]
    %v250 = vld [vmem:[#allocation7 + $0x2a4] sm:$0xf]
    %v251 = vld [vmem:[#allocation7 + $0x2a8] sm:$0xf]
    %v252 = vld [vmem:[#allocation7 + $0x2ac] sm:$0xf]
    %v253 = vld [vmem:[#allocation7 + $0x2b0] sm:$0xf]
    %v254 = vld [vmem:[#allocation7 + $0x2b4] sm:$0xf]
    %v255 = vld [vmem:[#allocation7 + $0x2b8] sm:$0xf]
    %v256 = vld [vmem:[#allocation7 + $0x2bc] sm:$0xf]
    %v257 = vld [vmem:[#allocation7 + $0x2c0] sm:$0xf]
    %v258 = vld [vmem:[#allocation7 + $0x2c4] sm:$0xf]
    %v259 = vld [vmem:[#allocation7 + $0x2c8] sm:$0xf]
    %v260 = vld [vmem:[#allocation7 + $0x2cc] sm:$0xf]
    %v261 = vld [vmem:[#allocation7 + $0x2d0] sm:$0xf]
    %v262 = vld [vmem:[#allocation7 + $0x2d4] sm:$0xf]
    %v263 = vld [vmem:[#allocation7 + $0x2d8] sm:$0xf]
    %v264 = vld [vmem:[#allocation7 + $0x2dc] sm:$0xf]
    %v265 = vld [vmem:[#allocation7 + $0x2e0] sm:$0xf]
    %v266 = vld [vmem:[#allocation7 + $0x2e4] sm:$0xf]
    %v267 = vld [vmem:[#allocation7 + $0x2e8] sm:$0xf]
    %v268 = vld [vmem:[#allocation7 + $0x2ec] sm:$0xf]
    %v269 = vld [vmem:[#allocation7 + $0x2f0] sm:$0xf]
    %v270 = vld [vmem:[#allocation7 + $0x2f4] sm:$0xf]
    %v271 = vld [vmem:[#allocation7 + $0x2f8] sm:$0xf]
    %v272 = vld [vmem:[#allocation7 + $0x2fc] sm:$0xf]
    %v273 = vld [vmem:[#allocation7 + $0x300] sm:$0xf]
    %v274 = vld [vmem:[#allocation7 + $0x304] sm:$0xf]
    %v275 = vld [vmem:[#allocation7 + $0x308] sm:$0xf]
    %v276 = vld [vmem:[#allocation7 + $0x30c] sm:$0xf]
    %v277 = vld [vmem:[#allocation7 + $0x310] sm:$0xf]
    %v278 = vld [vmem:[#allocation7 + $0x314] sm:$0xf]
    %v279 = vld [vmem:[#allocation7 + $0x318] sm:$0xf]
    %v280 = vld [vmem:[#allocation7 + $0x31c] sm:$0xf]
    %v281 = vld [vmem:[#allocation7 + $0x320] sm:$0xf]
    %v282 = vld [vmem:[#allocation7 + $0x324] sm:$0xf]
    %v283 = vld [vmem:[#allocation7 + $0x328] sm:$0xf]
    %v284 = vld [vmem:[#allocation7 + $0x32c] sm:$0xf]
    %v285 = vld [vmem:[#allocation7 + $0x330] sm:$0xf]
    %v286 = vld [vmem:[#allocation7 + $0x334] sm:$0xf]
    %v287 = vld [vmem:[#allocation7 + $0x338] sm:$0xf]
    %v288 = vld [vmem:[#allocation7 + $0x33c] sm:$0xf]
    %v289 = vld [vmem:[#allocation7 + $0x340] sm:$0xf]
    %v290 = vld [vmem:[#allocation7 + $0x344] sm:$0xf]
    %v291 = vld [vmem:[#allocation7 + $0x348] sm:$0xf]
    %v292 = vld [vmem:[#allocation7 + $0x34c] sm:$0xf]
    %v293 = vld [vmem:[#allocation7 + $0x350] sm:$0xf]
    %v294 = vld [vmem:[#allocation7 + $0x354] sm:$0xf]
    %v295 = vld [vmem:[#allocation7 + $0x358] sm:$0xf]
    %v296 = vld [vmem:[#allocation7 + $0x35c] sm:$0xf]
    %v297 = vld [vmem:[#allocation7 + $0x360] sm:$0xf]
    %v298 = vld [vmem:[#allocation7 + $0x364] sm:$0xf]
    %v299 = vld [vmem:[#allocation7 + $0x368] sm:$0xf]
    %v300 = vld [vmem:[#allocation7 + $0x36c] sm:$0xf]
    %v301 = vld [vmem:[#allocation7 + $0x370] sm:$0xf]
    %v302 = vld [vmem:[#allocation7 + $0x374] sm:$0xf]
    %v303 = vld [vmem:[#allocation7 + $0x378] sm:$0xf]
    %v304 = vld [vmem:[#allocation7 + $0x37c] sm:$0xf]
    %v305 = vld [vmem:[#allocation7 + $0x380] sm:$0xf]
    %v306 = vld [vmem:[#allocation7 + $0x384] sm:$0xf]
    %v307 = vld [vmem:[#allocation7 + $0x388] sm:$0xf]
    %v308 = vld [vmem:[#allocation7 + $0x38c] sm:$0xf]
    %v309 = vld [vmem:[#allocation7 + $0x390] sm:$0xf]
    %v310 = vld [vmem:[#allocation7 + $0x394] sm:$0xf]
    %v311 = vld [vmem:[#allocation7 + $0x398] sm:$0xf]
    %v312 = vld [vmem:[#allocation7 + $0x39c] sm:$0xf]
    %v313 = vld [vmem:[#allocation7 + $0x3a0] sm:$0xf]
    %v314 = vld [vmem:[#allocation7 + $0x3a4] sm:$0xf]
    %v315 = vld [vmem:[#allocation7 + $0x3a8] sm:$0xf]
    %v316 = vld [vmem:[#allocation7 + $0x3ac] sm:$0xf]
    %v317 = vld [vmem:[#allocation7 + $0x3b0] sm:$0xf]
    %v318 = vld [vmem:[#allocation7 + $0x3b4] sm:$0xf]
    %v319 = vld [vmem:[#allocation7 + $0x3b8] sm:$0xf]
    %v320 = vld [vmem:[#allocation7 + $0x3bc] sm:$0xf]
    %v321 = vld [vmem:[#allocation7 + $0x3c0] sm:$0xf]
    %v322 = vld [vmem:[#allocation7 + $0x3c4] sm:$0xf]
    %v323 = vld [vmem:[#allocation7 + $0x3c8] sm:$0xf]
    %v324 = vld [vmem:[#allocation7 + $0x3cc] sm:$0xf]
    %v325 = vld [vmem:[#allocation7 + $0x3d0] sm:$0xf]
    %v326 = vld [vmem:[#allocation7 + $0x3d4] sm:$0xf]
    %v327 = vld [vmem:[#allocation7 + $0x3d8] sm:$0xf]
    %v328 = vld [vmem:[#allocation7 + $0x3dc] sm:$0xf]
    %v329 = vld [vmem:[#allocation7 + $0x3e0] sm:$0xf]
    %v330 = vld [vmem:[#allocation7 + $0x3e4] sm:$0xf]
    %v331 = vld [vmem:[#allocation7 + $0x3e8] sm:$0xf]
    %v332 = vld [vmem:[#allocation7 + $0x3ec] sm:$0xf]
    %v333 = vld [vmem:[#allocation7 + $0x3f0] sm:$0xf]
    %v334 = vld [vmem:[#allocation7 + $0x3f4] sm:$0xf]
    %v335 = vld [vmem:[#allocation7 + $0x3f8] sm:$0xf]
    %v336 = vld [vmem:[#allocation7 + $0x3fc] sm:$0xf]
    %v337 = vld [vmem:[%s3] sm:$0x1]
    %v339 = vperm.slane %v337, 0
    %v373 = vunpack.c.l.b16 %v49
    %v374 = vunpack.c.h.b16 %v49
    %v375 = vunpack.c.l.b16 %v50
    %v376 = vunpack.c.h.b16 %v50
    %v377 = vunpack.c.l.b16 %v51
    %v378 = vunpack.c.h.b16 %v51
    %v379 = vunpack.c.l.b16 %v52
    %v380 = vunpack.c.h.b16 %v52
    %v381 = vunpack.c.l.b16 %v53
    %v382 = vunpack.c.h.b16 %v53
    %v383 = vunpack.c.l.b16 %v54
    %v384 = vunpack.c.h.b16 %v54
    %v385 = vunpack.c.l.b16 %v55
    %v386 = vunpack.c.h.b16 %v55
    %v387 = vunpack.c.l.b16 %v56
    %v388 = vunpack.c.h.b16 %v56
    %v389 = vunpack.c.l.b16 %v57
    %v390 = vunpack.c.h.b16 %v57
    %v391 = vunpack.c.l.b16 %v58
    %v392 = vunpack.c.h.b16 %v58
    %v393 = vunpack.c.l.b16 %v59
    %v394 = vunpack.c.h.b16 %v59
    %v395 = vunpack.c.l.b16 %v60
    %v396 = vunpack.c.h.b16 %v60
    %v397 = vunpack.c.l.b16 %v61
    %v398 = vunpack.c.h.b16 %v61
    %v399 = vunpack.c.l.b16 %v62
    %v400 = vunpack.c.h.b16 %v62
    %v401 = vunpack.c.l.b16 %v63
    %v402 = vunpack.c.h.b16 %v63
    %v403 = vunpack.c.l.b16 %v64
    %v404 = vunpack.c.h.b16 %v64
    %v405 = vunpack.c.l.b16 %v65
    %v406 = vunpack.c.h.b16 %v65
    %v407 = vunpack.c.l.b16 %v66
    %v408 = vunpack.c.h.b16 %v66
    %v409 = vunpack.c.l.b16 %v67
    %v410 = vunpack.c.h.b16 %v67
    %v411 = vunpack.c.l.b16 %v68
    %v412 = vunpack.c.h.b16 %v68
    %v413 = vunpack.c.l.b16 %v69
    %v414 = vunpack.c.h.b16 %v69
    %v415 = vunpack.c.l.b16 %v70
    %v416 = vunpack.c.h.b16 %v70
    %v417 = vunpack.c.l.b16 %v71
    %v418 = vunpack.c.h.b16 %v71
    %v419 = vunpack.c.l.b16 %v72
    %v420 = vunpack.c.h.b16 %v72
    %v421 = vunpack.c.l.b16 %v73
    %v422 = vunpack.c.h.b16 %v73
    %v423 = vunpack.c.l.b16 %v74
    %v424 = vunpack.c.h.b16 %v74
    %v425 = vunpack.c.l.b16 %v75
    %v426 = vunpack.c.h.b16 %v75
    %v427 = vunpack.c.l.b16 %v76
    %v428 = vunpack.c.h.b16 %v76
    %v429 = vunpack.c.l.b16 %v77
    %v430 = vunpack.c.h.b16 %v77
    %v431 = vunpack.c.l.b16 %v78
    %v432 = vunpack.c.h.b16 %v78
    %v433 = vunpack.c.l.b16 %v79
    %v434 = vunpack.c.h.b16 %v79
    %v435 = vunpack.c.l.b16 %v80
    %v436 = vunpack.c.h.b16 %v80
    %v437 = vpack.c.b16 %v389, %v373
    %v438 = vpack.c.b16 %v390, %v374
    %v439 = vpack.c.b16 %v391, %v375
    %v440 = vpack.c.b16 %v392, %v376
    %v441 = vpack.c.b16 %v393, %v377
    %v442 = vpack.c.b16 %v394, %v378
    %v443 = vpack.c.b16 %v395, %v379
    %v444 = vpack.c.b16 %v396, %v380
    %v445 = vpack.c.b16 %v397, %v381
    %v446 = vpack.c.b16 %v398, %v382
    %v447 = vpack.c.b16 %v399, %v383
    %v448 = vpack.c.b16 %v400, %v384
    %v449 = vpack.c.b16 %v401, %v385
    %v450 = vpack.c.b16 %v402, %v386
    %v451 = vpack.c.b16 %v403, %v387
    %v452 = vpack.c.b16 %v404, %v388
    %v453 = vpack.c.b16 %v421, %v405
    %v454 = vpack.c.b16 %v422, %v406
    %v455 = vpack.c.b16 %v423, %v407
    %v456 = vpack.c.b16 %v424, %v408
    %v457 = vpack.c.b16 %v425, %v409
    %v458 = vpack.c.b16 %v426, %v410
    %v459 = vpack.c.b16 %v427, %v411
    %v460 = vpack.c.b16 %v428, %v412
    %v461 = vpack.c.b16 %v429, %v413
    %v462 = vpack.c.b16 %v430, %v414
    %v463 = vpack.c.b16 %v431, %v415
    %v464 = vpack.c.b16 %v432, %v416
    %v465 = vpack.c.b16 %v433, %v417
    %v466 = vpack.c.b16 %v434, %v418
    %v467 = vpack.c.b16 %v435, %v419
    %v468 = vpack.c.b16 %v436, %v420
    %v757 = vunpack.c.l.b16 %v81
    %v758 = vunpack.c.l.b16 %v82
    %v759 = vunpack.c.l.b16 %v83
    %v760 = vunpack.c.l.b16 %v84
    %v761 = vunpack.c.l.b16 %v85
    %v762 = vunpack.c.l.b16 %v86
    %v763 = vunpack.c.l.b16 %v87
    %v764 = vunpack.c.l.b16 %v88
    %v765 = vunpack.c.l.b16 %v89
    %v766 = vunpack.c.l.b16 %v90
    %v767 = vunpack.c.l.b16 %v91
    %v768 = vunpack.c.l.b16 %v92
    %v769 = vunpack.c.l.b16 %v93
    %v770 = vunpack.c.l.b16 %v94
    %v771 = vunpack.c.l.b16 %v95
    %v772 = vunpack.c.l.b16 %v96
    %v773 = vunpack.c.l.b16 %v97
    %v774 = vunpack.c.l.b16 %v98
    %v775 = vunpack.c.l.b16 %v99
    %v776 = vunpack.c.l.b16 %v100
    %v777 = vunpack.c.l.b16 %v101
    %v778 = vunpack.c.l.b16 %v102
    %v779 = vunpack.c.l.b16 %v103
    %v780 = vunpack.c.l.b16 %v104
    %v781 = vunpack.c.l.b16 %v105
    %v782 = vunpack.c.l.b16 %v106
    %v783 = vunpack.c.l.b16 %v107
    %v784 = vunpack.c.l.b16 %v108
    %v785 = vunpack.c.l.b16 %v109
    %v786 = vunpack.c.l.b16 %v110
    %v787 = vunpack.c.l.b16 %v111
    %v788 = vunpack.c.l.b16 %v112
    %v789 = vunpack.c.l.b16 %v113
    %v790 = vunpack.c.l.b16 %v114
    %v791 = vunpack.c.l.b16 %v115
    %v792 = vunpack.c.l.b16 %v116
    %v793 = vunpack.c.l.b16 %v117
    %v794 = vunpack.c.l.b16 %v118
    %v795 = vunpack.c.l.b16 %v119
    %v796 = vunpack.c.l.b16 %v120
    %v797 = vunpack.c.l.b16 %v121
    %v798 = vunpack.c.l.b16 %v122
    %v799 = vunpack.c.l.b16 %v123
    %v800 = vunpack.c.l.b16 %v124
    %v801 = vunpack.c.l.b16 %v125
    %v802 = vunpack.c.l.b16 %v126
    %v803 = vunpack.c.l.b16 %v127
    %v804 = vunpack.c.l.b16 %v128
    %v805 = vunpack.c.l.b16 %v129
    %v806 = vunpack.c.l.b16 %v130
    %v807 = vunpack.c.l.b16 %v131
    %v808 = vunpack.c.l.b16 %v132
    %v809 = vunpack.c.l.b16 %v133
    %v810 = vunpack.c.l.b16 %v134
    %v811 = vunpack.c.l.b16 %v135
    %v812 = vunpack.c.l.b16 %v136
    %v813 = vunpack.c.l.b16 %v137
    %v814 = vunpack.c.l.b16 %v138
    %v815 = vunpack.c.l.b16 %v139
    %v816 = vunpack.c.l.b16 %v140
    %v817 = vunpack.c.l.b16 %v141
    %v818 = vunpack.c.l.b16 %v142
    %v819 = vunpack.c.l.b16 %v143
    %v820 = vunpack.c.l.b16 %v144
    %v821 = vunpack.c.l.b16 %v145
    %v822 = vunpack.c.l.b16 %v146
    %v823 = vunpack.c.l.b16 %v147
    %v824 = vunpack.c.l.b16 %v148
    %v825 = vunpack.c.l.b16 %v149
    %v826 = vunpack.c.l.b16 %v150
    %v827 = vunpack.c.l.b16 %v151
    %v828 = vunpack.c.l.b16 %v152
    %v829 = vunpack.c.l.b16 %v153
    %v830 = vunpack.c.l.b16 %v154
    %v831 = vunpack.c.l.b16 %v155
    %v832 = vunpack.c.l.b16 %v156
    %v833 = vunpack.c.l.b16 %v157
    %v834 = vunpack.c.l.b16 %v158
    %v835 = vunpack.c.l.b16 %v159
    %v836 = vunpack.c.l.b16 %v160
    %v837 = vunpack.c.l.b16 %v161
    %v838 = vunpack.c.l.b16 %v162
    %v839 = vunpack.c.l.b16 %v163
    %v840 = vunpack.c.l.b16 %v164
    %v841 = vunpack.c.l.b16 %v165
    %v842 = vunpack.c.l.b16 %v166
    %v843 = vunpack.c.l.b16 %v167
    %v844 = vunpack.c.l.b16 %v168
    %v845 = vunpack.c.l.b16 %v169
    %v846 = vunpack.c.l.b16 %v170
    %v847 = vunpack.c.l.b16 %v171
    %v848 = vunpack.c.l.b16 %v172
    %v849 = vunpack.c.l.b16 %v173
    %v850 = vunpack.c.l.b16 %v174
    %v851 = vunpack.c.l.b16 %v175
    %v852 = vunpack.c.l.b16 %v176
    %v853 = vunpack.c.l.b16 %v177
    %v854 = vunpack.c.l.b16 %v178
    %v855 = vunpack.c.l.b16 %v179
    %v856 = vunpack.c.l.b16 %v180
    %v857 = vunpack.c.l.b16 %v181
    %v858 = vunpack.c.l.b16 %v182
    %v859 = vunpack.c.l.b16 %v183
    %v860 = vunpack.c.l.b16 %v184
    %v861 = vunpack.c.l.b16 %v185
    %v862 = vunpack.c.l.b16 %v186
    %v863 = vunpack.c.l.b16 %v187
    %v864 = vunpack.c.l.b16 %v188
    %v865 = vunpack.c.l.b16 %v189
    %v866 = vunpack.c.l.b16 %v190
    %v867 = vunpack.c.l.b16 %v191
    %v868 = vunpack.c.l.b16 %v192
    %v869 = vunpack.c.l.b16 %v193
    %v870 = vunpack.c.l.b16 %v194
    %v871 = vunpack.c.l.b16 %v195
    %v872 = vunpack.c.l.b16 %v196
    %v873 = vunpack.c.l.b16 %v197
    %v874 = vunpack.c.l.b16 %v198
    %v875 = vunpack.c.l.b16 %v199
    %v876 = vunpack.c.l.b16 %v200
    %v877 = vunpack.c.l.b16 %v201
    %v878 = vunpack.c.l.b16 %v202
    %v879 = vunpack.c.l.b16 %v203
    %v880 = vunpack.c.l.b16 %v204
    %v881 = vunpack.c.l.b16 %v205
    %v882 = vunpack.c.l.b16 %v206
    %v883 = vunpack.c.l.b16 %v207
    %v884 = vunpack.c.l.b16 %v208
    %v885 = vunpack.c.l.b16 %v209
    %v886 = vunpack.c.l.b16 %v210
    %v887 = vunpack.c.l.b16 %v211
    %v888 = vunpack.c.l.b16 %v212
    %v889 = vunpack.c.l.b16 %v213
    %v890 = vunpack.c.l.b16 %v214
    %v891 = vunpack.c.l.b16 %v215
    %v892 = vunpack.c.l.b16 %v216
    %v893 = vunpack.c.l.b16 %v217
    %v894 = vunpack.c.l.b16 %v218
    %v895 = vunpack.c.l.b16 %v219
    %v896 = vunpack.c.l.b16 %v220
    %v897 = vunpack.c.l.b16 %v221
    %v898 = vunpack.c.l.b16 %v222
    %v899 = vunpack.c.l.b16 %v223
    %v900 = vunpack.c.l.b16 %v224
    %v901 = vunpack.c.l.b16 %v225
    %v902 = vunpack.c.l.b16 %v226
    %v903 = vunpack.c.l.b16 %v227
    %v904 = vunpack.c.l.b16 %v228
    %v905 = vunpack.c.l.b16 %v229
    %v906 = vunpack.c.l.b16 %v230
    %v907 = vunpack.c.l.b16 %v231
    %v908 = vunpack.c.l.b16 %v232
    %v909 = vunpack.c.l.b16 %v233
    %v910 = vunpack.c.l.b16 %v234
    %v911 = vunpack.c.l.b16 %v235
    %v912 = vunpack.c.l.b16 %v236
    %v913 = vunpack.c.l.b16 %v237
    %v914 = vunpack.c.l.b16 %v238
    %v915 = vunpack.c.l.b16 %v239
    %v916 = vunpack.c.l.b16 %v240
    %v917 = vunpack.c.l.b16 %v241
    %v918 = vunpack.c.l.b16 %v242
    %v919 = vunpack.c.l.b16 %v243
    %v920 = vunpack.c.l.b16 %v244
    %v921 = vunpack.c.l.b16 %v245
    %v922 = vunpack.c.l.b16 %v246
    %v923 = vunpack.c.l.b16 %v247
    %v924 = vunpack.c.l.b16 %v248
    %v925 = vunpack.c.l.b16 %v249
    %v926 = vunpack.c.l.b16 %v250
    %v927 = vunpack.c.l.b16 %v251
    %v928 = vunpack.c.l.b16 %v252
    %v929 = vunpack.c.l.b16 %v253
    %v930 = vunpack.c.l.b16 %v254
    %v931 = vunpack.c.l.b16 %v255
    %v932 = vunpack.c.l.b16 %v256
    %v933 = vunpack.c.l.b16 %v257
    %v934 = vunpack.c.l.b16 %v258
    %v935 = vunpack.c.l.b16 %v259
    %v936 = vunpack.c.l.b16 %v260
    %v937 = vunpack.c.l.b16 %v261
    %v938 = vunpack.c.l.b16 %v262
    %v939 = vunpack.c.l.b16 %v263
    %v940 = vunpack.c.l.b16 %v264
    %v941 = vunpack.c.l.b16 %v265
    %v942 = vunpack.c.l.b16 %v266
    %v943 = vunpack.c.l.b16 %v267
    %v944 = vunpack.c.l.b16 %v268
    %v945 = vunpack.c.l.b16 %v269
    %v946 = vunpack.c.l.b16 %v270
    %v947 = vunpack.c.l.b16 %v271
    %v948 = vunpack.c.l.b16 %v272
    %v949 = vunpack.c.l.b16 %v273
    %v950 = vunpack.c.l.b16 %v274
    %v951 = vunpack.c.l.b16 %v275
    %v952 = vunpack.c.l.b16 %v276
    %v953 = vunpack.c.l.b16 %v277
    %v954 = vunpack.c.l.b16 %v278
    %v955 = vunpack.c.l.b16 %v279
    %v956 = vunpack.c.l.b16 %v280
    %v957 = vunpack.c.l.b16 %v281
    %v958 = vunpack.c.l.b16 %v282
    %v959 = vunpack.c.l.b16 %v283
    %v960 = vunpack.c.l.b16 %v284
    %v961 = vunpack.c.l.b16 %v285
    %v962 = vunpack.c.l.b16 %v286
    %v963 = vunpack.c.l.b16 %v287
    %v964 = vunpack.c.l.b16 %v288
    %v965 = vunpack.c.l.b16 %v289
    %v966 = vunpack.c.l.b16 %v290
    %v967 = vunpack.c.l.b16 %v291
    %v968 = vunpack.c.l.b16 %v292
    %v969 = vunpack.c.l.b16 %v293
    %v970 = vunpack.c.l.b16 %v294
    %v971 = vunpack.c.l.b16 %v295
    %v972 = vunpack.c.l.b16 %v296
    %v973 = vunpack.c.l.b16 %v297
    %v974 = vunpack.c.l.b16 %v298
    %v975 = vunpack.c.l.b16 %v299
    %v976 = vunpack.c.l.b16 %v300
    %v977 = vunpack.c.l.b16 %v301
    %v978 = vunpack.c.l.b16 %v302
    %v979 = vunpack.c.l.b16 %v303
    %v980 = vunpack.c.l.b16 %v304
    %v981 = vunpack.c.l.b16 %v305
    %v982 = vunpack.c.l.b16 %v306
    %v983 = vunpack.c.l.b16 %v307
    %v984 = vunpack.c.l.b16 %v308
    %v985 = vunpack.c.l.b16 %v309
    %v986 = vunpack.c.l.b16 %v310
    %v987 = vunpack.c.l.b16 %v311
    %v988 = vunpack.c.l.b16 %v312
    %v989 = vunpack.c.l.b16 %v313
    %v990 = vunpack.c.l.b16 %v314
    %v991 = vunpack.c.l.b16 %v315
    %v992 = vunpack.c.l.b16 %v316
    %v993 = vunpack.c.l.b16 %v317
    %v994 = vunpack.c.l.b16 %v318
    %v995 = vunpack.c.l.b16 %v319
    %v996 = vunpack.c.l.b16 %v320
    %v997 = vunpack.c.l.b16 %v321
    %v998 = vunpack.c.l.b16 %v322
    %v999 = vunpack.c.l.b16 %v323
    %v1000 = vunpack.c.l.b16 %v324
    %v1001 = vunpack.c.l.b16 %v325
    %v1002 = vunpack.c.l.b16 %v326
    %v1003 = vunpack.c.l.b16 %v327
    %v1004 = vunpack.c.l.b16 %v328
    %v1005 = vunpack.c.l.b16 %v329
    %v1006 = vunpack.c.l.b16 %v330
    %v1007 = vunpack.c.l.b16 %v331
    %v1008 = vunpack.c.l.b16 %v332
    %v1009 = vunpack.c.l.b16 %v333
    %v1010 = vunpack.c.l.b16 %v334
    %v1011 = vunpack.c.l.b16 %v335
    %v1012 = vunpack.c.l.b16 %v336
    %v1013 = vpack.c.b16 %v758, %v757
    %v1014 = vpack.c.b16 %v760, %v759
    %v1015 = vpack.c.b16 %v762, %v761
    %v1016 = vpack.c.b16 %v764, %v763
    %v1017 = vpack.c.b16 %v766, %v765
    %v1018 = vpack.c.b16 %v768, %v767
    %v1019 = vpack.c.b16 %v770, %v769
    %v1020 = vpack.c.b16 %v772, %v771
    %v1021 = vpack.c.b16 %v774, %v773
    %v1022 = vpack.c.b16 %v776, %v775
    %v1023 = vpack.c.b16 %v778, %v777
    %v1024 = vpack.c.b16 %v780, %v779
    %v1025 = vpack.c.b16 %v782, %v781
    %v1026 = vpack.c.b16 %v784, %v783
    %v1027 = vpack.c.b16 %v786, %v785
    %v1028 = vpack.c.b16 %v788, %v787
    %v1029 = vpack.c.b16 %v790, %v789
    %v1030 = vpack.c.b16 %v792, %v791
    %v1031 = vpack.c.b16 %v794, %v793
    %v1032 = vpack.c.b16 %v796, %v795
    %v1033 = vpack.c.b16 %v798, %v797
    %v1034 = vpack.c.b16 %v800, %v799
    %v1035 = vpack.c.b16 %v802, %v801
    %v1036 = vpack.c.b16 %v804, %v803
    %v1037 = vpack.c.b16 %v806, %v805
    %v1038 = vpack.c.b16 %v808, %v807
    %v1039 = vpack.c.b16 %v810, %v809
    %v1040 = vpack.c.b16 %v812, %v811
    %v1041 = vpack.c.b16 %v814, %v813
    %v1042 = vpack.c.b16 %v816, %v815
    %v1043 = vpack.c.b16 %v818, %v817
    %v1044 = vpack.c.b16 %v820, %v819
    %v1045 = vpack.c.b16 %v822, %v821
    %v1046 = vpack.c.b16 %v824, %v823
    %v1047 = vpack.c.b16 %v826, %v825
    %v1048 = vpack.c.b16 %v828, %v827
    %v1049 = vpack.c.b16 %v830, %v829
    %v1050 = vpack.c.b16 %v832, %v831
    %v1051 = vpack.c.b16 %v834, %v833
    %v1052 = vpack.c.b16 %v836, %v835
    %v1053 = vpack.c.b16 %v838, %v837
    %v1054 = vpack.c.b16 %v840, %v839
    %v1055 = vpack.c.b16 %v842, %v841
    %v1056 = vpack.c.b16 %v844, %v843
    %v1057 = vpack.c.b16 %v846, %v845
    %v1058 = vpack.c.b16 %v848, %v847
    %v1059 = vpack.c.b16 %v850, %v849
    %v1060 = vpack.c.b16 %v852, %v851
    %v1061 = vpack.c.b16 %v854, %v853
    %v1062 = vpack.c.b16 %v856, %v855
    %v1063 = vpack.c.b16 %v858, %v857
    %v1064 = vpack.c.b16 %v860, %v859
    %v1065 = vpack.c.b16 %v862, %v861
    %v1066 = vpack.c.b16 %v864, %v863
    %v1067 = vpack.c.b16 %v866, %v865
    %v1068 = vpack.c.b16 %v868, %v867
    %v1069 = vpack.c.b16 %v870, %v869
    %v1070 = vpack.c.b16 %v872, %v871
    %v1071 = vpack.c.b16 %v874, %v873
    %v1072 = vpack.c.b16 %v876, %v875
    %v1073 = vpack.c.b16 %v878, %v877
    %v1074 = vpack.c.b16 %v880, %v879
    %v1075 = vpack.c.b16 %v882, %v881
    %v1076 = vpack.c.b16 %v884, %v883
    %v1077 = vpack.c.b16 %v886, %v885
    %v1078 = vpack.c.b16 %v888, %v887
    %v1079 = vpack.c.b16 %v890, %v889
    %v1080 = vpack.c.b16 %v892, %v891
    %v1081 = vpack.c.b16 %v894, %v893
    %v1082 = vpack.c.b16 %v896, %v895
    %v1083 = vpack.c.b16 %v898, %v897
    %v1084 = vpack.c.b16 %v900, %v899
    %v1085 = vpack.c.b16 %v902, %v901
    %v1086 = vpack.c.b16 %v904, %v903
    %v1087 = vpack.c.b16 %v906, %v905
    %v1088 = vpack.c.b16 %v908, %v907
    %v1089 = vpack.c.b16 %v910, %v909
    %v1090 = vpack.c.b16 %v912, %v911
    %v1091 = vpack.c.b16 %v914, %v913
    %v1092 = vpack.c.b16 %v916, %v915
    %v1093 = vpack.c.b16 %v918, %v917
    %v1094 = vpack.c.b16 %v920, %v919
    %v1095 = vpack.c.b16 %v922, %v921
    %v1096 = vpack.c.b16 %v924, %v923
    %v1097 = vpack.c.b16 %v926, %v925
    %v1098 = vpack.c.b16 %v928, %v927
    %v1099 = vpack.c.b16 %v930, %v929
    %v1100 = vpack.c.b16 %v932, %v931
    %v1101 = vpack.c.b16 %v934, %v933
    %v1102 = vpack.c.b16 %v936, %v935
    %v1103 = vpack.c.b16 %v938, %v937
    %v1104 = vpack.c.b16 %v940, %v939
    %v1105 = vpack.c.b16 %v942, %v941
    %v1106 = vpack.c.b16 %v944, %v943
    %v1107 = vpack.c.b16 %v946, %v945
    %v1108 = vpack.c.b16 %v948, %v947
    %v1109 = vpack.c.b16 %v950, %v949
    %v1110 = vpack.c.b16 %v952, %v951
    %v1111 = vpack.c.b16 %v954, %v953
    %v1112 = vpack.c.b16 %v956, %v955
    %v1113 = vpack.c.b16 %v958, %v957
    %v1114 = vpack.c.b16 %v960, %v959
    %v1115 = vpack.c.b16 %v962, %v961
    %v1116 = vpack.c.b16 %v964, %v963
    %v1117 = vpack.c.b16 %v966, %v965
    %v1118 = vpack.c.b16 %v968, %v967
    %v1119 = vpack.c.b16 %v970, %v969
    %v1120 = vpack.c.b16 %v972, %v971
    %v1121 = vpack.c.b16 %v974, %v973
    %v1122 = vpack.c.b16 %v976, %v975
    %v1123 = vpack.c.b16 %v978, %v977
    %v1124 = vpack.c.b16 %v980, %v979
    %v1125 = vpack.c.b16 %v982, %v981
    %v1126 = vpack.c.b16 %v984, %v983
    %v1127 = vpack.c.b16 %v986, %v985
    %v1128 = vpack.c.b16 %v988, %v987
    %v1129 = vpack.c.b16 %v990, %v989
    %v1130 = vpack.c.b16 %v992, %v991
    %v1131 = vpack.c.b16 %v994, %v993
    %v1132 = vpack.c.b16 %v996, %v995
    %v1133 = vpack.c.b16 %v998, %v997
    %v1134 = vpack.c.b16 %v1000, %v999
    %v1135 = vpack.c.b16 %v1002, %v1001
    %v1136 = vpack.c.b16 %v1004, %v1003
    %v1137 = vpack.c.b16 %v1006, %v1005
    %v1138 = vpack.c.b16 %v1008, %v1007
    %v1139 = vpack.c.b16 %v1010, %v1009
    %v1140 = vpack.c.b16 %v1012, %v1011
    %1269 = vmatpush.bf16.msra.mxu0 %v1020
    %1270 = vmatpush.bf16.msra.mxu0 %v1019
    %1271 = vmatpush.bf16.msra.mxu0 %v1018
    %1272 = vmatpush.bf16.msra.mxu0 %v1017
    %1273 = vmatpush.bf16.msra.mxu0 %v1016
    %1274 = vmatpush.bf16.msra.mxu0 %v1015
    %1275 = vmatpush.bf16.msra.mxu0 %v1014
    %1276 = vmatpush.bf16.msra.mxu0 %v1013
    %1277 = vmatmul.bf16.gmra.mxu0 %v437
    %v1278 = vpop.f32.mrf.mxu0
    %v1279 = vadd.f32 %v339, %v1278
    %v1280 = vpop.f32.mrf.mxu0
    %v1281 = vadd.f32 %v339, %v1280
    %1282 = vmatmul.bf16.gmra.mxu0 %v453
    %v1283 = vpop.f32.mrf.mxu0
    %v1284 = vadd.f32 %v339, %v1283
    %v1285 = vpop.f32.mrf.mxu0
    %v1286 = vadd.f32 %v339, %v1285
    %1287 = vdwg.mxu0
    %1288 = vmatpush.bf16.msra.mxu0 %v1028
    %1289 = vmatpush.bf16.msra.mxu0 %v1027
    %1290 = vmatpush.bf16.msra.mxu0 %v1026
    %1291 = vmatpush.bf16.msra.mxu0 %v1025
    %1292 = vmatpush.bf16.msra.mxu0 %v1024
    %1293 = vmatpush.bf16.msra.mxu0 %v1023
    %1294 = vmatpush.bf16.msra.mxu0 %v1022
    %1295 = vmatpush.bf16.msra.mxu0 %v1021
    %1296 = vmatmul.bf16.gmra.mxu0 %v438
    %v1297 = vpop.f32.mrf.mxu0
    %v1298 = vadd.f32 %v1279, %v1297
    %v1299 = vpop.f32.mrf.mxu0
    %v1300 = vadd.f32 %v1281, %v1299
    %1301 = vmatmul.bf16.gmra.mxu0 %v454
    %v1302 = vpop.f32.mrf.mxu0
    %v1303 = vadd.f32 %v1284, %v1302
    %v1304 = vpop.f32.mrf.mxu0
    %v1305 = vadd.f32 %v1286, %v1304
    %1306 = vdwg.mxu0
    %1307 = vmatpush.bf16.msra.mxu0 %v1036
    %1308 = vmatpush.bf16.msra.mxu0 %v1035
    %1309 = vmatpush.bf16.msra.mxu0 %v1034
    %1310 = vmatpush.bf16.msra.mxu0 %v1033
    %1311 = vmatpush.bf16.msra.mxu0 %v1032
    %1312 = vmatpush.bf16.msra.mxu0 %v1031
    %1313 = vmatpush.bf16.msra.mxu0 %v1030
    %1314 = vmatpush.bf16.msra.mxu0 %v1029
    %1315 = vmatmul.bf16.gmra.mxu0 %v439
    %v1316 = vpop.f32.mrf.mxu0
    %v1317 = vadd.f32 %v1298, %v1316
    %v1318 = vpop.f32.mrf.mxu0
    %v1319 = vadd.f32 %v1300, %v1318
    %1320 = vmatmul.bf16.gmra.mxu0 %v455
    %v1321 = vpop.f32.mrf.mxu0
    %v1322 = vadd.f32 %v1303, %v1321
    %v1323 = vpop.f32.mrf.mxu0
    %v1324 = vadd.f32 %v1305, %v1323
    %1325 = vdwg.mxu0
    %1326 = vmatpush.bf16.msra.mxu0 %v1044
    %1327 = vmatpush.bf16.msra.mxu0 %v1043
    %1328 = vmatpush.bf16.msra.mxu0 %v1042
    %1329 = vmatpush.bf16.msra.mxu0 %v1041
    %1330 = vmatpush.bf16.msra.mxu0 %v1040
    %1331 = vmatpush.bf16.msra.mxu0 %v1039
    %1332 = vmatpush.bf16.msra.mxu0 %v1038
    %1333 = vmatpush.bf16.msra.mxu0 %v1037
    %1334 = vmatmul.bf16.gmra.mxu0 %v440
    %v1335 = vpop.f32.mrf.mxu0
    %v1336 = vadd.f32 %v1317, %v1335
    %v1337 = vpop.f32.mrf.mxu0
    %v1338 = vadd.f32 %v1319, %v1337
    %1339 = vmatmul.bf16.gmra.mxu0 %v456
    %v1340 = vpop.f32.mrf.mxu0
    %v1341 = vadd.f32 %v1322, %v1340
    %v1342 = vpop.f32.mrf.mxu0
    %v1343 = vadd.f32 %v1324, %v1342
    %1344 = vdwg.mxu0
    %1345 = vmatpush.bf16.msra.mxu0 %v1052
    %1346 = vmatpush.bf16.msra.mxu0 %v1051
    %1347 = vmatpush.bf16.msra.mxu0 %v1050
    %1348 = vmatpush.bf16.msra.mxu0 %v1049
    %1349 = vmatpush.bf16.msra.mxu0 %v1048
    %1350 = vmatpush.bf16.msra.mxu0 %v1047
    %1351 = vmatpush.bf16.msra.mxu0 %v1046
    %1352 = vmatpush.bf16.msra.mxu0 %v1045
    %1353 = vmatmul.bf16.gmra.mxu0 %v441
    %v1354 = vpop.f32.mrf.mxu0
    %v1355 = vadd.f32 %v1336, %v1354
    %v1356 = vpop.f32.mrf.mxu0
    %v1357 = vadd.f32 %v1338, %v1356
    %1358 = vmatmul.bf16.gmra.mxu0 %v457
    %v1359 = vpop.f32.mrf.mxu0
    %v1360 = vadd.f32 %v1341, %v1359
    %v1361 = vpop.f32.mrf.mxu0
    %v1362 = vadd.f32 %v1343, %v1361
    %1363 = vdwg.mxu0
    %1364 = vmatpush.bf16.msra.mxu0 %v1060
    %1365 = vmatpush.bf16.msra.mxu0 %v1059
    %1366 = vmatpush.bf16.msra.mxu0 %v1058
    %1367 = vmatpush.bf16.msra.mxu0 %v1057
    %1368 = vmatpush.bf16.msra.mxu0 %v1056
    %1369 = vmatpush.bf16.msra.mxu0 %v1055
    %1370 = vmatpush.bf16.msra.mxu0 %v1054
    %1371 = vmatpush.bf16.msra.mxu0 %v1053
    %1372 = vmatmul.bf16.gmra.mxu0 %v442
    %v1373 = vpop.f32.mrf.mxu0
    %v1374 = vadd.f32 %v1355, %v1373
    %v1375 = vpop.f32.mrf.mxu0
    %v1376 = vadd.f32 %v1357, %v1375
    %1377 = vmatmul.bf16.gmra.mxu0 %v458
    %v1378 = vpop.f32.mrf.mxu0
    %v1379 = vadd.f32 %v1360, %v1378
    %v1380 = vpop.f32.mrf.mxu0
    %v1381 = vadd.f32 %v1362, %v1380
    %1382 = vdwg.mxu0
    %1383 = vmatpush.bf16.msra.mxu0 %v1068
    %1384 = vmatpush.bf16.msra.mxu0 %v1067
    %1385 = vmatpush.bf16.msra.mxu0 %v1066
    %1386 = vmatpush.bf16.msra.mxu0 %v1065
    %1387 = vmatpush.bf16.msra.mxu0 %v1064
    %1388 = vmatpush.bf16.msra.mxu0 %v1063
    %1389 = vmatpush.bf16.msra.mxu0 %v1062
    %1390 = vmatpush.bf16.msra.mxu0 %v1061
    %1391 = vmatmul.bf16.gmra.mxu0 %v443
    %v1392 = vpop.f32.mrf.mxu0
    %v1393 = vadd.f32 %v1374, %v1392
    %v1394 = vpop.f32.mrf.mxu0
    %v1395 = vadd.f32 %v1376, %v1394
    %1396 = vmatmul.bf16.gmra.mxu0 %v459
    %v1397 = vpop.f32.mrf.mxu0
    %v1398 = vadd.f32 %v1379, %v1397
    %v1399 = vpop.f32.mrf.mxu0
    %v1400 = vadd.f32 %v1381, %v1399
    %1401 = vdwg.mxu0
    %1402 = vmatpush.bf16.msra.mxu0 %v1076
    %1403 = vmatpush.bf16.msra.mxu0 %v1075
    %1404 = vmatpush.bf16.msra.mxu0 %v1074
    %1405 = vmatpush.bf16.msra.mxu0 %v1073
    %1406 = vmatpush.bf16.msra.mxu0 %v1072
    %1407 = vmatpush.bf16.msra.mxu0 %v1071
    %1408 = vmatpush.bf16.msra.mxu0 %v1070
    %1409 = vmatpush.bf16.msra.mxu0 %v1069
    %1410 = vmatmul.bf16.gmra.mxu0 %v444
    %v1411 = vpop.f32.mrf.mxu0
    %v1412 = vadd.f32 %v1393, %v1411
    %v1413 = vpop.f32.mrf.mxu0
    %v1414 = vadd.f32 %v1395, %v1413
    %1415 = vmatmul.bf16.gmra.mxu0 %v460
    %v1416 = vpop.f32.mrf.mxu0
    %v1417 = vadd.f32 %v1398, %v1416
    %v1418 = vpop.f32.mrf.mxu0
    %v1419 = vadd.f32 %v1400, %v1418
    %1420 = vdwg.mxu0
    %1421 = vmatpush.bf16.msra.mxu0 %v1084
    %1422 = vmatpush.bf16.msra.mxu0 %v1083
    %1423 = vmatpush.bf16.msra.mxu0 %v1082
    %1424 = vmatpush.bf16.msra.mxu0 %v1081
    %1425 = vmatpush.bf16.msra.mxu0 %v1080
    %1426 = vmatpush.bf16.msra.mxu0 %v1079
    %1427 = vmatpush.bf16.msra.mxu0 %v1078
    %1428 = vmatpush.bf16.msra.mxu0 %v1077
    %1429 = vmatmul.bf16.gmra.mxu0 %v445
    %v1430 = vpop.f32.mrf.mxu0
    %v1431 = vadd.f32 %v1412, %v1430
    %v1432 = vpop.f32.mrf.mxu0
    %v1433 = vadd.f32 %v1414, %v1432
    %1434 = vmatmul.bf16.gmra.mxu0 %v461
    %v1435 = vpop.f32.mrf.mxu0
    %v1436 = vadd.f32 %v1417, %v1435
    %v1437 = vpop.f32.mrf.mxu0
    %v1438 = vadd.f32 %v1419, %v1437
    %1439 = vdwg.mxu0
    %1440 = vmatpush.bf16.msra.mxu0 %v1092
    %1441 = vmatpush.bf16.msra.mxu0 %v1091
    %1442 = vmatpush.bf16.msra.mxu0 %v1090
    %1443 = vmatpush.bf16.msra.mxu0 %v1089
    %1444 = vmatpush.bf16.msra.mxu0 %v1088
    %1445 = vmatpush.bf16.msra.mxu0 %v1087
    %1446 = vmatpush.bf16.msra.mxu0 %v1086
    %1447 = vmatpush.bf16.msra.mxu0 %v1085
    %1448 = vmatmul.bf16.gmra.mxu0 %v446
    %v1449 = vpop.f32.mrf.mxu0
    %v1450 = vadd.f32 %v1431, %v1449
    %v1451 = vpop.f32.mrf.mxu0
    %v1452 = vadd.f32 %v1433, %v1451
    %1453 = vmatmul.bf16.gmra.mxu0 %v462
    %v1454 = vpop.f32.mrf.mxu0
    %v1455 = vadd.f32 %v1436, %v1454
    %v1456 = vpop.f32.mrf.mxu0
    %v1457 = vadd.f32 %v1438, %v1456
    %1458 = vdwg.mxu0
    %1459 = vmatpush.bf16.msra.mxu0 %v1100
    %1460 = vmatpush.bf16.msra.mxu0 %v1099
    %1461 = vmatpush.bf16.msra.mxu0 %v1098
    %1462 = vmatpush.bf16.msra.mxu0 %v1097
    %1463 = vmatpush.bf16.msra.mxu0 %v1096
    %1464 = vmatpush.bf16.msra.mxu0 %v1095
    %1465 = vmatpush.bf16.msra.mxu0 %v1094
    %1466 = vmatpush.bf16.msra.mxu0 %v1093
    %1467 = vmatmul.bf16.gmra.mxu0 %v447
    %v1468 = vpop.f32.mrf.mxu0
    %v1469 = vadd.f32 %v1450, %v1468
    %v1470 = vpop.f32.mrf.mxu0
    %v1471 = vadd.f32 %v1452, %v1470
    %1472 = vmatmul.bf16.gmra.mxu0 %v463
    %v1473 = vpop.f32.mrf.mxu0
    %v1474 = vadd.f32 %v1455, %v1473
    %v1475 = vpop.f32.mrf.mxu0
    %v1476 = vadd.f32 %v1457, %v1475
    %1477 = vdwg.mxu0
    %1478 = vmatpush.bf16.msra.mxu0 %v1108
    %1479 = vmatpush.bf16.msra.mxu0 %v1107
    %1480 = vmatpush.bf16.msra.mxu0 %v1106
    %1481 = vmatpush.bf16.msra.mxu0 %v1105
    %1482 = vmatpush.bf16.msra.mxu0 %v1104
    %1483 = vmatpush.bf16.msra.mxu0 %v1103
    %1484 = vmatpush.bf16.msra.mxu0 %v1102
    %1485 = vmatpush.bf16.msra.mxu0 %v1101
    %1486 = vmatmul.bf16.gmra.mxu0 %v448
    %v1487 = vpop.f32.mrf.mxu0
    %v1488 = vadd.f32 %v1469, %v1487
    %v1489 = vpop.f32.mrf.mxu0
    %v1490 = vadd.f32 %v1471, %v1489
    %1491 = vmatmul.bf16.gmra.mxu0 %v464
    %v1492 = vpop.f32.mrf.mxu0
    %v1493 = vadd.f32 %v1474, %v1492
    %v1494 = vpop.f32.mrf.mxu0
    %v1495 = vadd.f32 %v1476, %v1494
    %1496 = vdwg.mxu0
    %1497 = vmatpush.bf16.msra.mxu0 %v1116
    %1498 = vmatpush.bf16.msra.mxu0 %v1115
    %1499 = vmatpush.bf16.msra.mxu0 %v1114
    %1500 = vmatpush.bf16.msra.mxu0 %v1113
    %1501 = vmatpush.bf16.msra.mxu0 %v1112
    %1502 = vmatpush.bf16.msra.mxu0 %v1111
    %1503 = vmatpush.bf16.msra.mxu0 %v1110
    %1504 = vmatpush.bf16.msra.mxu0 %v1109
    %1505 = vmatmul.bf16.gmra.mxu0 %v449
    %v1506 = vpop.f32.mrf.mxu0
    %v1507 = vadd.f32 %v1488, %v1506
    %v1508 = vpop.f32.mrf.mxu0
    %v1509 = vadd.f32 %v1490, %v1508
    %1510 = vmatmul.bf16.gmra.mxu0 %v465
    %v1511 = vpop.f32.mrf.mxu0
    %v1512 = vadd.f32 %v1493, %v1511
    %v1513 = vpop.f32.mrf.mxu0
    %v1514 = vadd.f32 %v1495, %v1513
    %1515 = vdwg.mxu0
    %1516 = vmatpush.bf16.msra.mxu0 %v1124
    %1517 = vmatpush.bf16.msra.mxu0 %v1123
    %1518 = vmatpush.bf16.msra.mxu0 %v1122
    %1519 = vmatpush.bf16.msra.mxu0 %v1121
    %1520 = vmatpush.bf16.msra.mxu0 %v1120
    %1521 = vmatpush.bf16.msra.mxu0 %v1119
    %1522 = vmatpush.bf16.msra.mxu0 %v1118
    %1523 = vmatpush.bf16.msra.mxu0 %v1117
    %1524 = vmatmul.bf16.gmra.mxu0 %v450
    %v1525 = vpop.f32.mrf.mxu0
    %v1526 = vadd.f32 %v1507, %v1525
    %v1527 = vpop.f32.mrf.mxu0
    %v1528 = vadd.f32 %v1509, %v1527
    %1529 = vmatmul.bf16.gmra.mxu0 %v466
    %v1530 = vpop.f32.mrf.mxu0
    %v1531 = vadd.f32 %v1512, %v1530
    %v1532 = vpop.f32.mrf.mxu0
    %v1533 = vadd.f32 %v1514, %v1532
    %1534 = vdwg.mxu0
    %1535 = vmatpush.bf16.msra.mxu0 %v1132
    %1536 = vmatpush.bf16.msra.mxu0 %v1131
    %1537 = vmatpush.bf16.msra.mxu0 %v1130
    %1538 = vmatpush.bf16.msra.mxu0 %v1129
    %1539 = vmatpush.bf16.msra.mxu0 %v1128
    %1540 = vmatpush.bf16.msra.mxu0 %v1127
    %1541 = vmatpush.bf16.msra.mxu0 %v1126
    %1542 = vmatpush.bf16.msra.mxu0 %v1125
    %1543 = vmatmul.bf16.gmra.mxu0 %v451
    %v1544 = vpop.f32.mrf.mxu0
    %v1545 = vadd.f32 %v1526, %v1544
    %v1546 = vpop.f32.mrf.mxu0
    %v1547 = vadd.f32 %v1528, %v1546
    %1548 = vmatmul.bf16.gmra.mxu0 %v467
    %v1549 = vpop.f32.mrf.mxu0
    %v1550 = vadd.f32 %v1531, %v1549
    %v1551 = vpop.f32.mrf.mxu0
    %v1552 = vadd.f32 %v1533, %v1551
    %1553 = vdwg.mxu0
    %1554 = vmatpush.bf16.msra.mxu0 %v1140
    %1555 = vmatpush.bf16.msra.mxu0 %v1139
    %1556 = vmatpush.bf16.msra.mxu0 %v1138
    %1557 = vmatpush.bf16.msra.mxu0 %v1137
    %1558 = vmatpush.bf16.msra.mxu0 %v1136
    %1559 = vmatpush.bf16.msra.mxu0 %v1135
    %1560 = vmatpush.bf16.msra.mxu0 %v1134
    %1561 = vmatpush.bf16.msra.mxu0 %v1133
    %1562 = vmatmul.bf16.gmra.mxu0 %v452
    %v1563 = vpop.f32.mrf.mxu0
    %v1564 = vadd.f32 %v1545, %v1563
    %v1565 = vpop.f32.mrf.mxu0
    %v1566 = vadd.f32 %v1547, %v1565
    %1567 = vmatmul.bf16.gmra.mxu0 %v468
    %v1568 = vpop.f32.mrf.mxu0
    %v1569 = vadd.f32 %v1550, %v1568
    %v1570 = vpop.f32.mrf.mxu0
    %v1571 = vadd.f32 %v1552, %v1570
    %1572 = vdwg.mxu0
    %v1573 = vmax.f32 %v1564, 0.0
    %v1574 = vmax.f32 %v1566, 0.0
    %v1575 = vmax.f32 %v1569, 0.0
    %v1576 = vmax.f32 %v1571, 0.0
    %1577 = vst [vmem:[#allocation9] sm:$0xff] %v1573
    %1578 = vst [vmem:[#allocation9 + $0x8] sm:$0xff] %v1574
    %1579 = vst [vmem:[#allocation9 + $0x10] sm:$0xff] %v1575
    %1580 = vst [vmem:[#allocation9 + $0x18] sm:$0xff] %v1576
    // Predicated region
    $region22: #{tpu_custom_call.1} parent=1 // pred_check
      _
    $region23: #{tpu_custom_call.1} parent=1 // pred_check_branch
      %1582 = sbr.rel (0) target = $region25
    $region24: #{tpu_custom_call.1} parent=1 // pred_region
      %1584 = vsyncadd [#allocation6], 0
      %s1585 = sshll.u32 [#allocation9], 4
      %s1586 = int_to_ptr.vmem [resolvable:$true] %s1585
      %s1587 = sshll.u32 %s4, 4
      %s1588 = int_to_ptr.hbm [resolvable:$true] %s1587
      %1593 = dma.vmem_to_hbm [thread:$0]  %s1586, 512, %s1588, [#allocation6], 128, 128, 8
    $region25: #{tpu_custom_call.1} parent=1 // pred_fallthru
      _
    // Predicated region
    $region26: #{tpu_custom_call.1} parent=1 // pred_check
      _
    $region27: #{tpu_custom_call.1} parent=1 // pred_check_branch
      %1595 = sbr.rel (0) target = $region29
    $region28: #{tpu_custom_call.1} parent=1 // pred_region
      %1597 = dma.done [#allocation6], 512
    $region29: #{tpu_custom_call.1} parent=1 // pred_fallthru
      _
    %1598 = vsyncpa [#allocation5], 1
    %1599 = vsyncpa [#allocation8], 1
    %1600 = vsyncpa [#allocation6], 1

</llo_original>
